<compile_context>
chip_gen: v5e
topology: v5e:2x2
jax: 0.10.0
libtpu: 0.0.40
codegen_flags: <defaults>
</compile_context>

<pallas_src>
import functools

import jax
import jax.numpy as jnp
from jax.experimental import pallas as pl
from jax.experimental.pallas import tpu as pltpu

LANES = 128
SUBLANES = 8


def _hpfl2_kernel(x_ref, y_ref, m_ref, o_ref, *, tile_rows, total_rows, need_mask):
    # x/y/m_ref: (tile_rows, 128) tiles; o_ref: (1, 8, 128) per-tile partials.
    x = x_ref[...].astype(jnp.float32)
    y = y_ref[...].astype(jnp.float32)
    m = m_ref[...].astype(jnp.float32)
    d = x - y
    w = d * d * m

    if need_mask:
        # The last grid step may read past the end of the slab (garbage rows);
        # zero their contribution. 2-D iota (TPU requires >=2D iota).
        base = pl.program_id(0) * tile_rows
        row = jax.lax.broadcasted_iota(jnp.int32, (tile_rows, LANES), 0)
        w = jnp.where(base + row < total_rows, w, 0.0)

    # (tr, 128) -> (tr//8, 8, 128): groups coincide with the physical (8, 128)
    # vreg tiles, so the axis-0 sum lowers to pure VPU vreg adds (no XLU,
    # no SMEM serialization).
    o_ref[0] = jnp.sum(w.reshape(tile_rows // SUBLANES, SUBLANES, LANES), axis=0)


def hpfl2(X, Y, mask, *, tile_rows=4096):
    """Compute sum((X - Y)^2 * mask) / X.size  (HPFL2.forward)."""
    assert X.shape == Y.shape == mask.shape
    numel = X.size

    # Lane-dense [R, 128] view. For 128-aligned sizes this is a free (bitcast)
    # reshape: no pad, no astype, no extra HBM traffic before the kernel.
    if numel % LANES == 0 and numel >= SUBLANES * LANES:
        def to_slab(a):
            return a.reshape(numel // LANES, LANES)
    else:
        # Rare fallback (unaligned / tiny inputs): zero-pad flat copies.
        # Zero padding contributes 0 to the sum.
        def to_slab(a):
            flat = a.reshape(-1)
            pad = (-numel) % (SUBLANES * LANES)
            flat = jnp.pad(flat, (0, pad))
            return flat.reshape(-1, LANES)

    xs, ys, ms = to_slab(X), to_slab(Y), to_slab(mask)
    R = xs.shape[0]

    # Row tile: multiple of 8, never larger than the slab.
    tr = max(SUBLANES, (min(tile_rows, R) // SUBLANES) * SUBLANES)
    grid_n = pl.cdiv(R, tr)
    need_mask = (R % tr) != 0

    in_bytes = sum(int(a.size) * a.dtype.itemsize for a in (xs, ys, ms))
    out_bytes = grid_n * SUBLANES * LANES * 4
    cost = pl.CostEstimate(
        flops=4 * numel, transcendentals=0, bytes_accessed=in_bytes + out_bytes)

    kernel = functools.partial(
        _hpfl2_kernel, tile_rows=tr, total_rows=R, need_mask=need_mask)

    partials = pl.pallas_call(
        kernel,
        out_shape=jax.ShapeDtypeStruct((grid_n, SUBLANES, LANES), jnp.float32),
        grid_spec=pltpu.PrefetchScalarGridSpec(
            num_scalar_prefetch=0,
            grid=(grid_n,),
            in_specs=[
                pl.BlockSpec((tr, LANES), lambda i: (i, 0)),
                pl.BlockSpec((tr, LANES), lambda i: (i, 0)),
                pl.BlockSpec((tr, LANES), lambda i: (i, 0)),
            ],
            out_specs=pl.BlockSpec((1, SUBLANES, LANES), lambda i: (i, 0, 0)),
        ),
        compiler_params=pltpu.CompilerParams(
            dimension_semantics=("parallel",),
            vmem_limit_bytes=32 * 1024 * 1024,
        ),
        cost_estimate=cost,
    )(xs, ys, ms)

    # Tiny final reduce (num_tiles * 1024 f32) in plain JAX.
    return jnp.sum(partials) / numel


if __name__ == "__main__":
    key = jax.random.PRNGKey(0)
    kx, ky, km = jax.random.split(key, 3)

    # Small NCHW inputs consistent with the module.
    shape = (2, 4, 16, 16)
    X = jax.random.normal(kx, shape, dtype=jnp.float32)
    Y = jax.random.normal(ky, shape, dtype=jnp.float32)
    mask = jax.random.uniform(km, shape, dtype=jnp.float32)

    score = jax.block_until_ready(hpfl2(X, Y, mask))
    ref = jnp.sum(jnp.square(X - Y) * mask) / X.size
    assert jnp.allclose(score, ref, rtol=1e-5, atol=1e-6), (score, ref)

    # Exercise the partial-last-tile (in-kernel row-masking) path:
    # numel = 1536 -> R = 12 rows, tr = 8, grid = 2, last tile masked.
    shape2 = (2, 3, 16, 16)
    X2 = jax.random.normal(kx, shape2, dtype=jnp.float32)
    Y2 = jax.random.normal(ky, shape2, dtype=jnp.float32)
    m2 = jax.random.uniform(km, shape2, dtype=jnp.float32)
    s2 = jax.block_until_ready(hpfl2(X2, Y2, m2))
    r2 = jnp.sum(jnp.square(X2 - Y2) * m2) / X2.size
    assert jnp.allclose(s2, r2, rtol=1e-5, atol=1e-6), (s2, r2)

    # Exercise the unaligned/tiny fallback (zero-pad) path: numel = 294.
    shape3 = (2, 3, 7, 7)
    X3 = jax.random.normal(kx, shape3, dtype=jnp.float32)
    Y3 = jax.random.normal(ky, shape3, dtype=jnp.float32)
    m3 = jax.random.uniform(km, shape3, dtype=jnp.float32)
    s3 = jax.block_until_ready(hpfl2(X3, Y3, m3))
    r3 = jnp.sum(jnp.square(X3 - Y3) * m3) / X3.size
    assert jnp.allclose(s3, r3, rtol=1e-5, atol=1e-6), (s3, r3)

    # Larger multi-tile case (exercises several grid steps with big tiles).
    shape4 = (8, 16, 64, 64)   # numel = 524288 -> R = 4096 rows
    X4 = jax.random.normal(kx, shape4, dtype=jnp.float32)
    Y4 = jax.random.normal(ky, shape4, dtype=jnp.float32)
    m4 = jax.random.uniform(km, shape4, dtype=jnp.float32)
    s4 = jax.block_until_ready(hpfl2(X4, Y4, m4, tile_rows=1024))
    r4 = jnp.sum(jnp.square(X4 - Y4) * m4) / X4.size
    assert jnp.allclose(s4, r4, rtol=1e-5, atol=1e-6), (s4, r4)

    print("KERNEL_OK")
</pallas_src>

<mosaic_0001>
module attributes {stable_mosaic.version = 11 : i64} {
  func.func @_hpfl2_kernel(%arg0: i32, %arg1: memref<16x128xf32, #tpu.memory_space<vmem>>, %arg2: memref<16x128xf32, #tpu.memory_space<vmem>>, %arg3: memref<16x128xf32, #tpu.memory_space<vmem>>, %arg4: memref<1x8x128xf32, #tpu.memory_space<vmem>>) attributes {dimension_semantics = [#tpu.dimension_semantics<parallel>], iteration_bounds = array<i64: 1>, scalar_prefetch = 0 : i64, scratch_operands = 0 : i64, tpu.core_type = #tpu.core_type<tc>, window_params = [{transform_indices = @transform_0, window_bounds = array<i64: 16, 128>}, {transform_indices = @transform_1, window_bounds = array<i64: 16, 128>}, {transform_indices = @transform_2, window_bounds = array<i64: 16, 128>}, {transform_indices = @transform_3, window_bounds = array<i64: 1, 8, 128>}]} {
    %c0 = arith.constant 0 : index
    %c0_0 = arith.constant 0 : index
    %0 = vector.load %arg1[%c0, %c0_0] : memref<16x128xf32, #tpu.memory_space<vmem>>, vector<16x128xf32>
    %c0_1 = arith.constant 0 : index
    %c0_2 = arith.constant 0 : index
    %1 = vector.load %arg2[%c0_1, %c0_2] : memref<16x128xf32, #tpu.memory_space<vmem>>, vector<16x128xf32>
    %c0_3 = arith.constant 0 : index
    %c0_4 = arith.constant 0 : index
    %2 = vector.load %arg3[%c0_3, %c0_4] : memref<16x128xf32, #tpu.memory_space<vmem>>, vector<16x128xf32>
    %3 = arith.subf %0, %1 : vector<16x128xf32>
    %4 = arith.mulf %3, %3 : vector<16x128xf32>
    %5 = arith.mulf %4, %2 : vector<16x128xf32>
    %6 = vector.shape_cast %5 : vector<16x128xf32> to vector<2x8x128xf32>
    %cst = arith.constant dense<0.000000e+00> : vector<8x128xf32>
    %7 = vector.multi_reduction <add>, %6, %cst [0] : vector<2x8x128xf32> to vector<8x128xf32>
    %c0_5 = arith.constant 0 : index
    %c0_6 = arith.constant 0 : index
    %c0_7 = arith.constant 0 : index
    %8 = vector.load %arg4[%c0_5, %c0_6, %c0_7] : memref<1x8x128xf32, #tpu.memory_space<vmem>>, vector<1x8x128xf32>
    %9 = vector.shape_cast %8 : vector<1x8x128xf32> to vector<8x128xf32>
    %10 = vector.shape_cast %7 : vector<8x128xf32> to vector<1x8x128xf32>
    tpu.vector_store %arg4[%c0_5, %c0_6, %c0_7], %10 {strides = array<i32>} : memref<1x8x128xf32, #tpu.memory_space<vmem>>, vector<1x8x128xf32>,
    return
  }
  func.func @transform_0(%arg0: i32) -> (i32, i32) {
    %c0_i32 = arith.constant 0 : i32
    %c0_i32_0 = arith.constant 0 : i32
    return %arg0, %c0_i32 : i32, i32
  }
  func.func @transform_1(%arg0: i32) -> (i32, i32) {
    %c0_i32 = arith.constant 0 : i32
    %c0_i32_0 = arith.constant 0 : i32
    return %arg0, %c0_i32 : i32, i32
  }
  func.func @transform_2(%arg0: i32) -> (i32, i32) {
    %c0_i32 = arith.constant 0 : i32
    %c0_i32_0 = arith.constant 0 : i32
    return %arg0, %c0_i32 : i32, i32
  }
  func.func @transform_3(%arg0: i32) -> (i32, i32, i32) {
    %c0_i32 = arith.constant 0 : i32
    %c0_i32_0 = arith.constant 0 : i32
    %c0_i32_1 = arith.constant 0 : i32
    return %arg0, %c0_i32, %c0_i32_0 : i32, i32, i32
  }
}

</mosaic_0001>

<llo_original>
// kernel: tpu_custom_call.1
$region0: #{tpu_custom_call.1}
  #allocation0 [shape = 'u32[]', space=smem, size = 0x4, offset = 0x4, fixed_abs, tag = 'smem constant byte address 0x4 - core index']
  #allocation1 [shape = 'u32[72,128]{1,0:T(1,128)}', space=vmem, size = 0x9000, scoped, tag = 'internal scratch']
  %s0 = inlined_call_operand.hbm [shape: f32[16,128], index: 0, kind: input, shape index: {}]
  %s1 = inlined_call_operand.hbm [shape: f32[16,128], index: 1, kind: input, shape index: {}]
  %s2 = inlined_call_operand.hbm [shape: f32[16,128], index: 2, kind: input, shape index: {}]
  %s3 = inlined_call_operand.hbm [shape: f32[1,8,128], index: 3, kind: output, shape index: {}]
  %s4 = sld [smem:[#allocation0]]
  $region34: #{tpu_custom_call.1} parent=0
    _
  %s6 = ssub.s32 1, %s4
  %s7 = scalar_select 0, %s6, %s4
  $region1: #{tpu_custom_call.1} parent=0
    #allocation2 [shape = 'u8[8192]{0}', space=vmem, size = 0x2000, scoped, tag = 'input window, operand 0, single buffered']
    #allocation3 [shape = 's32[1]{0}', space=sflag, size = 0x4, scoped, tag = 'scoped memory for tpu_custom_call.1']
    #allocation4 [shape = 's32[1]{0}', space=sflag, size = 0x4, scoped, tag = 'scoped memory for tpu_custom_call.1']
    #allocation5 [shape = 'u8[8192]{0}', space=vmem, size = 0x2000, scoped, tag = 'input window, operand 1, single buffered']
    #allocation6 [shape = 's32[1]{0}', space=sflag, size = 0x4, scoped, tag = 'scoped memory for tpu_custom_call.1']
    #allocation7 [shape = 'u8[8192]{0}', space=vmem, size = 0x2000, scoped, tag = 'input window, operand 2, single buffered']
    #allocation8 [shape = 'u8[4096]{0}', space=vmem, size = 0x1000, scoped, tag = 'output window, operand 0, single buffered']
    %8 = vsyncpa [#allocation3], 0
    %9 = vsyncpa [#allocation6], 0
    %10 = vsyncpa [#allocation4], 0
    // Predicated region
    $region2: #{tpu_custom_call.1} parent=1 // pred_check
      _
    $region3: #{tpu_custom_call.1} parent=1 // pred_check_branch
      %12 = sbr.rel (0) target = $region5
    $region4: #{tpu_custom_call.1} parent=1 // pred_region
      %14 = vsyncadd [#allocation3], 0
      %s15 = sshll.u32 %s0, 4
      %s16 = int_to_ptr.hbm [resolvable:$true] %s15
      %s17 = sshll.u32 [#allocation2], 4
      %s18 = int_to_ptr.vmem [resolvable:$true] %s17
      %23 = dma.hbm_to_vmem [thread:$0]  %s16, 256, %s18, [#allocation3], 128, 128, 8
    $region5: #{tpu_custom_call.1} parent=1 // pred_fallthru
      _
    // Predicated region
    $region6: #{tpu_custom_call.1} parent=1 // pred_check
      _
    $region7: #{tpu_custom_call.1} parent=1 // pred_check_branch
      %25 = sbr.rel (0) target = $region9
    $region8: #{tpu_custom_call.1} parent=1 // pred_region
      %27 = vsyncadd [#allocation6], 0
      %s28 = sshll.u32 %s1, 4
      %s29 = int_to_ptr.hbm [resolvable:$true] %s28
      %s30 = sshll.u32 [#allocation5], 4
      %s31 = int_to_ptr.vmem [resolvable:$true] %s30
      %36 = dma.hbm_to_vmem [thread:$0]  %s29, 256, %s31, [#allocation6], 128, 128, 8
    $region9: #{tpu_custom_call.1} parent=1 // pred_fallthru
      _
    // Predicated region
    $region10: #{tpu_custom_call.1} parent=1 // pred_check
      _
    $region11: #{tpu_custom_call.1} parent=1 // pred_check_branch
      %38 = sbr.rel (0) target = $region13
    $region12: #{tpu_custom_call.1} parent=1 // pred_region
      %40 = vsyncadd [#allocation6], 0
      %s41 = sshll.u32 %s2, 4
      %s42 = int_to_ptr.hbm [resolvable:$true] %s41
      %s43 = sshll.u32 [#allocation7], 4
      %s44 = int_to_ptr.vmem [resolvable:$true] %s43
      %49 = dma.hbm_to_vmem [thread:$0]  %s42, 256, %s44, [#allocation6], 128, 128, 8
    $region13: #{tpu_custom_call.1} parent=1 // pred_fallthru
      _
    // Predicated region
    $region14: #{tpu_custom_call.1} parent=1 // pred_check
      _
    $region15: #{tpu_custom_call.1} parent=1 // pred_check_branch
      %51 = sbr.rel (0) target = $region17
    $region16: #{tpu_custom_call.1} parent=1 // pred_region
      %53 = dma.done [#allocation3], 256
    $region17: #{tpu_custom_call.1} parent=1 // pred_fallthru
      _
    // Predicated region
    $region18: #{tpu_custom_call.1} parent=1 // pred_check
      _
    $region19: #{tpu_custom_call.1} parent=1 // pred_check_branch
      %55 = sbr.rel (0) target = $region21
    $region20: #{tpu_custom_call.1} parent=1 // pred_region
      %57 = dma.done [#allocation6], 256
    $region21: #{tpu_custom_call.1} parent=1 // pred_fallthru
      _
    // Predicated region
    $region22: #{tpu_custom_call.1} parent=1 // pred_check
      _
    $region23: #{tpu_custom_call.1} parent=1 // pred_check_branch
      %59 = sbr.rel (0) target = $region25
    $region24: #{tpu_custom_call.1} parent=1 // pred_region
      %61 = dma.done [#allocation6], 256
    $region25: #{tpu_custom_call.1} parent=1 // pred_fallthru
      _
    %v62 = vld [vmem:[#allocation2] sm:$0xff]
    %v63 = vld [vmem:[#allocation2 + $0x8] sm:$0xff]
    %v64 = vld [vmem:[#allocation5] sm:$0xff]
    %v65 = vld [vmem:[#allocation5 + $0x8] sm:$0xff]
    %v66 = vld [vmem:[#allocation7] sm:$0xff]
    %v67 = vld [vmem:[#allocation7 + $0x8] sm:$0xff]
    %v68 = vsub.f32 %v62, %v64
    %v69 = vsub.f32 %v63, %v65
    %v70 = vmul.f32 %v68, %v68
    %v71 = vmul.f32 %v69, %v69
    %v72 = vmul.f32 %v70, %v66
    %v73 = vmul.f32 %v71, %v67
    %v74 = vadd.f32 %v72, %v73
    %75 = vst [vmem:[#allocation8] sm:$0xff] %v74
    // Predicated region
    $region26: #{tpu_custom_call.1} parent=1 // pred_check
      _
    $region27: #{tpu_custom_call.1} parent=1 // pred_check_branch
      %77 = sbr.rel (0) target = $region29
    $region28: #{tpu_custom_call.1} parent=1 // pred_region
      %79 = vsyncadd [#allocation4], 0
      %s81 = sshll.u32 [#allocation8], 4
      %s82 = int_to_ptr.vmem [resolvable:$true] %s81
      %s83 = sshll.u32 %s3, 4
      %s84 = int_to_ptr.hbm [resolvable:$true] %s83
      %86 = dma.vmem_to_hbm [thread:$0]  %s82, 128, %s84, [#allocation4]
    $region29: #{tpu_custom_call.1} parent=1 // pred_fallthru
      _
    // Predicated region
    $region30: #{tpu_custom_call.1} parent=1 // pred_check
      _
    $region31: #{tpu_custom_call.1} parent=1 // pred_check_branch
      %88 = sbr.rel (0) target = $region33
    $region32: #{tpu_custom_call.1} parent=1 // pred_region
      %90 = dma.done [#allocation4], 128
    $region33: #{tpu_custom_call.1} parent=1 // pred_fallthru
      _
    %91 = vsyncpa [#allocation3], 1
    %92 = vsyncpa [#allocation6], 1
    %93 = vsyncpa [#allocation4], 1

</llo_original>
